<compile_context>
chip_gen: v6e
topology: v6e:2x2x1
jax: 0.10.0
libtpu: 0.0.40
codegen_flags: <defaults>
</compile_context>

<pallas_src>
import functools

import jax
import jax.numpy as jnp
from jax import lax
from jax.experimental import pallas as pl
from jax.experimental.pallas import tpu as pltpu

GROUPS = 32
EPS = 1e-6


def _vmem_limit_bytes():
    """Generation-aware VMEM budget (trace-time query, safe fallback)."""
    try:
        info = pltpu.get_tpu_info()
        cap = int(getattr(info, "vmem_capacity_bytes", 64 * 1024 * 1024))
    except Exception:
        cap = 64 * 1024 * 1024
    # ~85% of physical: ~54 MiB on v7x (64 MiB), ~108 MiB on v5e/v6e (128 MiB).
    return min(int(cap * 0.85), 110 * 1024 * 1024)


def _pick_tile(n, cap):
    """Largest row tile <= cap that divides n and is a multiple of 8 (or n itself)."""
    if n <= cap:
        return n
    t = (cap // 8) * 8
    while t >= 8:
        if n % t == 0:
            return t
        t -= 8
    # TODO(synk): awkward spatial sizes (no multiple-of-8 divisor <= cap) fall
    # back to a single full-N tile, which may exceed the intended VMEM budget.
    return n


# ---------------------------------------------------------------------------
# Pass 1: GroupNorm statistics (per-channel sum / sum-of-squares over N).
# ---------------------------------------------------------------------------
def _gn_stats_kernel(x_ref, sum_ref, sumsq_ref):
    # x block: (1, TN, C); outputs (1, 1, C) stay resident across the N axis.
    @pl.when(pl.program_id(1) == 0)
    def _():
        sum_ref[...] = jnp.zeros(sum_ref.shape, sum_ref.dtype)
        sumsq_ref[...] = jnp.zeros(sumsq_ref.shape, sumsq_ref.dtype)

    x = x_ref[0].astype(jnp.float32)                       # (TN, C)
    sum_ref[0] += jnp.sum(x, axis=0, keepdims=True)        # (1, C)
    sumsq_ref[0] += jnp.sum(x * x, axis=0, keepdims=True)  # (1, C)


# ---------------------------------------------------------------------------
# Pass 2: fused GroupNorm (precomputed scale/shift) + concatenated K/V conv.
# ---------------------------------------------------------------------------
def _norm_kv_kernel(x_ref, scale_ref, shift_ref, wkvT_ref, bkv_ref, k_ref, v_ref):
    c = k_ref.shape[-1]
    hn = (x_ref[0].astype(jnp.float32) * scale_ref[0] + shift_ref[0]).astype(jnp.bfloat16)
    kv = jnp.dot(hn, wkvT_ref[...], preferred_element_type=jnp.float32) + bkv_ref[...]
    # Single (TN, 2C) matmul; split into K and V.  (If C < 128 in production,
    # a lane-dense packed output layout would avoid masked partial stores.)
    k_ref[0] = kv[:, :c].astype(k_ref.dtype)
    v_ref[0] = kv[:, c:].astype(v_ref.dtype)


# ---------------------------------------------------------------------------
# Pass 3: fused q projection + flash attention (online softmax over K/V tiles)
#         + proj_out + residual.  K/V either VMEM-resident (sliced in-kernel)
#         or streamed per kv grid step.
# ---------------------------------------------------------------------------
def _flash_q_proj_kernel(x_ref, scale_ref, shift_ref, wqT_ref, bq_ref,
                         k_ref, v_ref, wpT_ref, bp_ref, o_ref,
                         q_sc, m_sc, l_sc, acc_sc,
                         *, qk_scale, tk, resident):
    ki = pl.program_id(2)

    @pl.when(ki == 0)
    def _():
        # Fused GroupNorm + q projection from the residual tile already in VMEM;
        # q never touches HBM.  C**-0.5 is folded into q here.
        hn = x_ref[0].astype(jnp.float32) * scale_ref[0] + shift_ref[0]
        qf = jnp.dot(hn.astype(jnp.bfloat16), wqT_ref[...],
                     preferred_element_type=jnp.float32) + bq_ref[...]
        q_sc[...] = (qf * qk_scale).astype(q_sc.dtype)
        m_sc[...] = jnp.full(m_sc.shape, -jnp.inf, jnp.float32)
        l_sc[...] = jnp.zeros(l_sc.shape, jnp.float32)
        acc_sc[...] = jnp.zeros(acc_sc.shape, jnp.float32)

    if resident:
        # Whole K/V for this batch live in VMEM; slice the current kv tile.
        start = pl.multiple_of(ki * tk, tk)
        k = k_ref.at[0][pl.ds(start, tk), :]               # (TK, C) bf16
        v = v_ref.at[0][pl.ds(start, tk), :]
    else:
        k = k_ref[0]                                       # streamed (TK, C) bf16
        v = v_ref[0]

    q = q_sc[...]                                          # (TQ, C) bf16, pre-scaled
    # scores = q @ k^T via contracting dims -- no materialized transpose.
    s = lax.dot_general(q, k, (((1,), (1,)), ((), ())),
                        preferred_element_type=jnp.float32)        # (TQ, TK) f32

    m_prev = m_sc[...]
    m_new = jnp.maximum(m_prev, jnp.max(s, axis=-1, keepdims=True))
    alpha = jnp.exp(m_prev - m_new)
    p = jnp.exp(s - m_new)                                 # unnormalized probs (f32)
    l_sc[...] = alpha * l_sc[...] + jnp.sum(p, axis=-1, keepdims=True)
    acc_sc[...] = alpha * acc_sc[...] + jnp.dot(
        p.astype(jnp.bfloat16), v, preferred_element_type=jnp.float32)
    m_sc[...] = m_new

    @pl.when(ki == pl.num_programs(2) - 1)
    def _():
        attn = acc_sc[...] * pl.reciprocal(l_sc[...], approx=True)  # (TQ, C)
        out = jnp.dot(attn.astype(jnp.bfloat16), wpT_ref[...],
                      preferred_element_type=jnp.float32) + bp_ref[...]
        o_ref[0] = (x_ref[0].astype(jnp.float32) + out).astype(o_ref.dtype)


def spatial_self_attention(x_nchw, params, *, tn_cap=1024, tq_cap=512, tk_cap=512,
                           kv_resident=None):
    B, C, H, W = x_nchw.shape
    N = H * W
    assert C % GROUPS == 0, "GroupNorm(32) requires channels divisible by 32"
    f32, bf16 = jnp.float32, jnp.bfloat16
    vmem_limit = _vmem_limit_bytes()

    # NCHW -> (B, N, C)
    x = jnp.transpose(x_nchw, (0, 2, 3, 1)).reshape(B, N, C)

    # ---- pass 1: per-channel sums over the spatial axis ----
    TN1 = _pick_tile(N, tn_cap)
    sums, sumsqs = pl.pallas_call(
        _gn_stats_kernel,
        out_shape=(jax.ShapeDtypeStruct((B, 1, C), f32),
                   jax.ShapeDtypeStruct((B, 1, C), f32)),
        grid=(B, N // TN1),
        in_specs=[pl.BlockSpec((1, TN1, C), lambda b, n: (b, n, 0))],
        out_specs=(pl.BlockSpec((1, 1, C), lambda b, n: (b, 0, 0)),
                   pl.BlockSpec((1, 1, C), lambda b, n: (b, 0, 0))),
        compiler_params=pltpu.CompilerParams(
            dimension_semantics=("parallel", "arbitrary"),
            vmem_limit_bytes=vmem_limit),
    )(x)

    # Tiny (B, C)-sized glue: fold channel sums to per-group mean/rstd and a
    # fused per-(batch, channel) scale/shift applied inside the fused kernels.
    cg = C // GROUPS
    gamma = params["gamma"].astype(f32)
    beta = params["beta"].astype(f32)
    g_sum = sums.reshape(B, GROUPS, cg).sum(-1)            # (B, G)
    g_sumsq = sumsqs.reshape(B, GROUPS, cg).sum(-1)
    cnt = jnp.float32(N * cg)
    mean_g = g_sum / cnt
    # TODO(synk): E[x^2]-mean^2 can cancel for very large-magnitude activations;
    # acceptable for O(1)-scale activations (matches the PyTorch/f32 reference).
    var_g = jnp.maximum(g_sumsq / cnt - mean_g * mean_g, 0.0)
    rstd_g = lax.rsqrt(var_g + EPS)
    mean = jnp.repeat(mean_g, cg, axis=1)                  # (B, C)
    rstd = jnp.repeat(rstd_g, cg, axis=1)
    gn_scale = (gamma[None, :] * rstd).reshape(B, 1, C).astype(f32)
    gn_shift = (beta[None, :] - mean * gamma[None, :] * rstd).reshape(B, 1, C).astype(f32)

    # Pre-transposed bf16 weights (no in-kernel transposes); f32 biases.
    # K/V weights concatenated -> one MXU weight pipeline in pass 2.
    wqT = params["wq"].T.astype(bf16)
    wkvT = jnp.concatenate([params["wk"].T, params["wv"].T], axis=1).astype(bf16)  # (C, 2C)
    wpT = params["wp"].T.astype(bf16)
    bq = params["bq"].reshape(1, C).astype(f32)
    bkv = jnp.concatenate([params["bk"], params["bv"]]).reshape(1, 2 * C).astype(f32)
    bp = params["bp"].reshape(1, C).astype(f32)

    # ---- pass 2: GroupNorm + fused K/V projection, tiled over N ----
    TN2 = _pick_tile(N, min(tn_cap, 512))
    k, v = pl.pallas_call(
        _norm_kv_kernel,
        out_shape=(jax.ShapeDtypeStruct((B, N, C), bf16),) * 2,
        grid=(B, N // TN2),
        in_specs=[
            pl.BlockSpec((1, TN2, C), lambda b, n: (b, n, 0)),      # x
            pl.BlockSpec((1, 1, C), lambda b, n: (b, 0, 0)),        # gn scale
            pl.BlockSpec((1, 1, C), lambda b, n: (b, 0, 0)),        # gn shift
            pl.BlockSpec((C, 2 * C), lambda b, n: (0, 0)),          # wkvT
            pl.BlockSpec((1, 2 * C), lambda b, n: (0, 0)),          # bkv
        ],
        out_specs=(pl.BlockSpec((1, TN2, C), lambda b, n: (b, n, 0)),) * 2,
        compiler_params=pltpu.CompilerParams(
            dimension_semantics=("parallel", "parallel"),
            vmem_limit_bytes=vmem_limit),
    )(x, gn_scale, gn_shift, wkvT, bkv)

    # ---- pass 3: tile sizing, K/V residency decision ----
    TQ = _pick_tile(N, tq_cap)
    TK = _pick_tile(N, tk_cap)
    # Keep >= 2 grid points on the parallel axes so both v7x TensorCores work.
    if B * (N // TQ) < 2:
        smaller = _pick_tile(N, max(N // 2, 8))
        if smaller < TQ:
            TQ = smaller

    x_item = jnp.dtype(x_nchw.dtype).itemsize

    def pass3_bytes(tq, tk, resident):
        kv_rows = N if resident else tk
        b = 2 * tq * C * 4                      # x tile (f32), double-buffered
        b += 2 * tq * C * x_item                # output tile, double-buffered
        b += 2 * 2 * C * C * 2                  # wqT + wpT (bf16), double-buffered
        b += 2 * 2 * kv_rows * C * 2            # K + V (bf16), double-buffered
        b += tq * C * 2 + tq * C * 4 + 2 * tq * 4   # scratch: q, acc, m, l
        b += 3 * tq * tk * 4 + tq * C * 4           # s/p temporaries + hn
        return b

    budget = int(0.7 * vmem_limit)
    if kv_resident is None:
        resident = pass3_bytes(TQ, TK, True) <= budget
    else:
        resident = bool(kv_resident)

    if not resident:
        # Streaming K/V: shrink tiles until the working set fits the budget.
        while pass3_bytes(TQ, TK, False) > budget:
            if TK >= TQ and TK > 64:
                nt = _pick_tile(N, TK // 2)
                if nt >= TK:
                    break
                TK = nt
            elif TQ > 64:
                nq = _pick_tile(N, TQ // 2)
                if nq >= TQ:
                    break
                TQ = nq
            else:
                break

    if resident:
        kv_spec = pl.BlockSpec((1, N, C), lambda b, qi, ki: (b, 0, 0))
    else:
        kv_spec = pl.BlockSpec((1, TK, C), lambda b, qi, ki: (b, ki, 0))

    # ---- pass 3: fused q projection + flash attention + proj_out + residual ----
    out = pl.pallas_call(
        functools.partial(_flash_q_proj_kernel,
                          qk_scale=float(C) ** (-0.5), tk=TK, resident=resident),
        out_shape=jax.ShapeDtypeStruct((B, N, C), x_nchw.dtype),
        grid=(B, N // TQ, N // TK),
        in_specs=[
            pl.BlockSpec((1, TQ, C), lambda b, qi, ki: (b, qi, 0)),   # x (q src + residual)
            pl.BlockSpec((1, 1, C), lambda b, qi, ki: (b, 0, 0)),     # gn scale
            pl.BlockSpec((1, 1, C), lambda b, qi, ki: (b, 0, 0)),     # gn shift
            pl.BlockSpec((C, C), lambda b, qi, ki: (0, 0)),           # wqT
            pl.BlockSpec((1, C), lambda b, qi, ki: (0, 0)),           # bq
            kv_spec,                                                   # k
            kv_spec,                                                   # v
            pl.BlockSpec((C, C), lambda b, qi, ki: (0, 0)),           # wpT
            pl.BlockSpec((1, C), lambda b, qi, ki: (0, 0)),           # bp
        ],
        out_specs=pl.BlockSpec((1, TQ, C), lambda b, qi, ki: (b, qi, 0)),
        scratch_shapes=[
            pltpu.VMEM((TQ, C), jnp.bfloat16),   # pre-scaled q (persists over kv steps)
            pltpu.VMEM((TQ, 1), jnp.float32),    # running max
            pltpu.VMEM((TQ, 1), jnp.float32),    # running row sum
            pltpu.VMEM((TQ, C), jnp.float32),    # output accumulator
        ],
        compiler_params=pltpu.CompilerParams(
            dimension_semantics=("parallel", "parallel", "arbitrary"),
            vmem_limit_bytes=vmem_limit),
    )(x, gn_scale, gn_shift, wqT, bq, k, v, wpT, bp)

    # (B, N, C) -> NCHW
    return jnp.transpose(out.reshape(B, H, W, C), (0, 3, 1, 2))


def _reference(x, params):
    # Pure-JAX f32 replica of the PyTorch forward for a correctness check.
    B, C, H, W = x.shape
    xg = x.reshape(B, GROUPS, C // GROUPS, H, W)
    mean = xg.mean(axis=(2, 3, 4), keepdims=True)
    var = ((xg - mean) ** 2).mean(axis=(2, 3, 4), keepdims=True)
    hn = ((xg - mean) / jnp.sqrt(var + EPS)).reshape(B, C, H, W)
    hn = hn * params["gamma"].reshape(1, C, 1, 1) + params["beta"].reshape(1, C, 1, 1)

    def conv1x1(t, w, b):
        return jnp.einsum("bchw,oc->bohw", t, w) + b.reshape(1, C, 1, 1)

    q = conv1x1(hn, params["wq"], params["bq"])
    k = conv1x1(hn, params["wk"], params["bk"])
    v = conv1x1(hn, params["wv"], params["bv"])
    q = q.reshape(B, C, H * W).transpose(0, 2, 1)   # b (hw) c
    k = k.reshape(B, C, H * W)                      # b c (hw)
    w_ = jnp.einsum("bij,bjk->bik", q, k) * (float(C) ** (-0.5))
    w_ = jax.nn.softmax(w_, axis=2)
    v = v.reshape(B, C, H * W)
    h_ = jnp.einsum("bij,bjk->bik", v, w_.transpose(0, 2, 1))
    h_ = h_.reshape(B, C, H, W)
    h_ = conv1x1(h_, params["wp"], params["bp"])
    return x + h_


def _init_params(key, C):
    ks = jax.random.split(key, 8)
    s = 0.1
    return {
        "gamma": jnp.ones((C,), jnp.float32),
        "beta": jnp.zeros((C,), jnp.float32),
        "wq": s * jax.random.normal(ks[0], (C, C), jnp.float32),
        "bq": s * jax.random.normal(ks[1], (C,), jnp.float32),
        "wk": s * jax.random.normal(ks[2], (C, C), jnp.float32),
        "bk": s * jax.random.normal(ks[3], (C,), jnp.float32),
        "wv": s * jax.random.normal(ks[4], (C, C), jnp.float32),
        "bv": s * jax.random.normal(ks[5], (C,), jnp.float32),
        "wp": s * jax.random.normal(ks[6], (C, C), jnp.float32),
        "bp": s * jax.random.normal(ks[7], (C,), jnp.float32),
    }


if __name__ == "__main__":
    key = jax.random.PRNGKey(0)
    kx, kp = jax.random.split(key)
    B, C, H, W = 2, 64, 16, 16          # C must be divisible by 32 (GroupNorm)
    x = jax.random.normal(kx, (B, C, H, W), jnp.float32)
    params = _init_params(kp, C)
    ref = _reference(x, params)

    # 1) Default config (resident K/V, single kv step at this size).
    out = jax.block_until_ready(spatial_self_attention(x, params))
    assert out.shape == (B, C, H, W)
    assert jnp.allclose(out, ref, rtol=3e-2, atol=3e-2), "default config mismatch"

    # 2) Small tile caps: exercises the multi-tile online-softmax loop with
    #    VMEM-resident K/V sliced via pl.ds (N = 256 -> 2x2 q/kv tiles).
    out2 = jax.block_until_ready(
        spatial_self_attention(x, params, tn_cap=128, tq_cap=128, tk_cap=128))
    assert jnp.allclose(out2, ref, rtol=3e-2, atol=3e-2), "resident multi-tile mismatch"

    # 3) Forced streaming K/V path (large-N fallback), multi-tile.
    out3 = jax.block_until_ready(
        spatial_self_attention(x, params, tn_cap=128, tq_cap=128, tk_cap=128,
                               kv_resident=False))
    assert jnp.allclose(out3, ref, rtol=3e-2, atol=3e-2), "streaming multi-tile mismatch"

    print("KERNEL_OK")
</pallas_src>

<mosaic_0001>
module attributes {stable_mosaic.version = 11 : i64} {
  func.func @_gn_stats_kernel(%arg0: i32, %arg1: i32, %arg2: memref<1x256x64xf32, #tpu.memory_space<vmem>>, %arg3: memref<1x1x64xf32, #tpu.memory_space<vmem>>, %arg4: memref<1x1x64xf32, #tpu.memory_space<vmem>>) attributes {dimension_semantics = [#tpu.dimension_semantics<parallel>, #tpu.dimension_semantics<arbitrary>], iteration_bounds = array<i64: 2, 1>, scalar_prefetch = 0 : i64, scratch_operands = 0 : i64, tpu.core_type = #tpu.core_type<tc>, window_params = [{transform_indices = @transform_0, window_bounds = array<i64: 1, 256, 64>}, {transform_indices = @transform_1, window_bounds = array<i64: 1, 1, 64>}, {transform_indices = @transform_2, window_bounds = array<i64: 1, 1, 64>}]} {
    %c0_i32 = arith.constant 0 : i32
    %0 = arith.cmpi eq, %arg1, %c0_i32 : i32
    %1 = arith.extui %0 : i1 to i32
    %c0_i32_0 = arith.constant 0 : i32
    %2 = arith.cmpi ne, %1, %c0_i32_0 : i32
    scf.if %2 {
      %cst_16 = arith.constant 0.000000e+00 : f32
      %22 = vector.broadcast %cst_16 : f32 to vector<1x1x64xf32>
      %c0_17 = arith.constant 0 : index
      %c0_18 = arith.constant 0 : index
      %c0_19 = arith.constant 0 : index
      %23 = vector.load %arg3[%c0_17, %c0_18, %c0_19] : memref<1x1x64xf32, #tpu.memory_space<vmem>>, vector<1x1x64xf32>
      tpu.vector_store %arg3[%c0_17, %c0_18, %c0_19], %22 {strides = array<i32>} : memref<1x1x64xf32, #tpu.memory_space<vmem>>, vector<1x1x64xf32>,
      %cst_20 = arith.constant 0.000000e+00 : f32
      %24 = vector.broadcast %cst_20 : f32 to vector<1x1x64xf32>
      %c0_21 = arith.constant 0 : index
      %c0_22 = arith.constant 0 : index
      %c0_23 = arith.constant 0 : index
      %25 = vector.load %arg4[%c0_21, %c0_22, %c0_23] : memref<1x1x64xf32, #tpu.memory_space<vmem>>, vector<1x1x64xf32>
      tpu.vector_store %arg4[%c0_21, %c0_22, %c0_23], %24 {strides = array<i32>} : memref<1x1x64xf32, #tpu.memory_space<vmem>>, vector<1x1x64xf32>,
    } else {
    }
    %c0 = arith.constant 0 : index
    %c0_1 = arith.constant 0 : index
    %c0_2 = arith.constant 0 : index
    %3 = vector.load %arg2[%c0, %c0_1, %c0_2] : memref<1x256x64xf32, #tpu.memory_space<vmem>>, vector<1x256x64xf32>
    %4 = vector.shape_cast %3 : vector<1x256x64xf32> to vector<256x64xf32>
    %c0_3 = arith.constant 0 : index
    %c0_4 = arith.constant 0 : index
    %c0_5 = arith.constant 0 : index
    %5 = vector.load %arg3[%c0_3, %c0_4, %c0_5] : memref<1x1x64xf32, #tpu.memory_space<vmem>>, vector<1x1x64xf32>
    %6 = vector.shape_cast %5 : vector<1x1x64xf32> to vector<1x64xf32>
    %cst = arith.constant dense<0.000000e+00> : vector<64xf32>
    %7 = vector.multi_reduction <add>, %4, %cst [0] : vector<256x64xf32> to vector<64xf32>
    %8 = vector.shape_cast %7 : vector<64xf32> to vector<1x64xf32>
    %9 = arith.addf %6, %8 : vector<1x64xf32>
    %c0_6 = arith.constant 0 : index
    %c0_7 = arith.constant 0 : index
    %c0_8 = arith.constant 0 : index
    %10 = vector.load %arg3[%c0_6, %c0_7, %c0_8] : memref<1x1x64xf32, #tpu.memory_space<vmem>>, vector<1x1x64xf32>
    %11 = vector.shape_cast %10 : vector<1x1x64xf32> to vector<1x64xf32>
    %12 = vector.shape_cast %9 : vector<1x64xf32> to vector<1x1x64xf32>
    tpu.vector_store %arg3[%c0_6, %c0_7, %c0_8], %12 {strides = array<i32>} : memref<1x1x64xf32, #tpu.memory_space<vmem>>, vector<1x1x64xf32>,
    %c0_9 = arith.constant 0 : index
    %c0_10 = arith.constant 0 : index
    %c0_11 = arith.constant 0 : index
    %13 = vector.load %arg4[%c0_9, %c0_10, %c0_11] : memref<1x1x64xf32, #tpu.memory_space<vmem>>, vector<1x1x64xf32>
    %14 = vector.shape_cast %13 : vector<1x1x64xf32> to vector<1x64xf32>
    %15 = arith.mulf %4, %4 : vector<256x64xf32>
    %cst_12 = arith.constant dense<0.000000e+00> : vector<64xf32>
    %16 = vector.multi_reduction <add>, %15, %cst_12 [0] : vector<256x64xf32> to vector<64xf32>
    %17 = vector.shape_cast %16 : vector<64xf32> to vector<1x64xf32>
    %18 = arith.addf %14, %17 : vector<1x64xf32>
    %c0_13 = arith.constant 0 : index
    %c0_14 = arith.constant 0 : index
    %c0_15 = arith.constant 0 : index
    %19 = vector.load %arg4[%c0_13, %c0_14, %c0_15] : memref<1x1x64xf32, #tpu.memory_space<vmem>>, vector<1x1x64xf32>
    %20 = vector.shape_cast %19 : vector<1x1x64xf32> to vector<1x64xf32>
    %21 = vector.shape_cast %18 : vector<1x64xf32> to vector<1x1x64xf32>
    tpu.vector_store %arg4[%c0_13, %c0_14, %c0_15], %21 {strides = array<i32>} : memref<1x1x64xf32, #tpu.memory_space<vmem>>, vector<1x1x64xf32>,
    return
  }
  func.func @transform_0(%arg0: i32, %arg1: i32) -> (i32, i32, i32) {
    %c0_i32 = arith.constant 0 : i32
    %c0_i32_0 = arith.constant 0 : i32
    return %arg0, %arg1, %c0_i32 : i32, i32, i32
  }
  func.func @transform_1(%arg0: i32, %arg1: i32) -> (i32, i32, i32) {
    %c0_i32 = arith.constant 0 : i32
    %c0_i32_0 = arith.constant 0 : i32
    %c0_i32_1 = arith.constant 0 : i32
    return %arg0, %c0_i32, %c0_i32_0 : i32, i32, i32
  }
  func.func @transform_2(%arg0: i32, %arg1: i32) -> (i32, i32, i32) {
    %c0_i32 = arith.constant 0 : i32
    %c0_i32_0 = arith.constant 0 : i32
    %c0_i32_1 = arith.constant 0 : i32
    return %arg0, %c0_i32, %c0_i32_0 : i32, i32, i32
  }
}

</mosaic_0001>

<llo_original>
// kernel: tpu_custom_call.1
$region0: #{tpu_custom_call.1}
  #allocation0 [shape = 'u32[]', space=smem, size = 0x4, offset = 0x4, fixed_abs, tag = 'smem constant byte address 0x4 - core index']
  #allocation1 [shape = 'u32[144,128]{1,0:T(1,128)}', space=vmem, size = 0x12000, scoped, tag = 'internal scratch']
  %s0 = inlined_call_operand.vmem [shape: f32[2,256,64], index: 0, kind: input, shape index: {}]
  %s1 = inlined_call_operand.hbm [shape: f32[2,1,64], index: 1, kind: output, shape index: {0}]
  %s2 = inlined_call_operand.hbm [shape: f32[2,1,64], index: 2, kind: output, shape index: {1}]
  %3 = xla_tuple %s1, %s2
  %s4 = sld [smem:[#allocation0]]
  $region49: #{tpu_custom_call.1} parent=0
    _
  %s6 = ssub.s32 1, %s4
  %s7 = scalar_select 0, %s6, %s4
  $region1: #{tpu_custom_call.1} parent=0
    #allocation2 [shape = 'u8[1024]{0}', space=vmem, size = 0x400, scoped, tag = 'output window, operand 0']
    #allocation3 [shape = 's32[2]{0}', space=sflag, size = 0x8, scoped, tag = 'scoped memory for tpu_custom_call.1']
    #allocation4 [shape = 'u8[1024]{0}', space=vmem, size = 0x400, scoped, tag = 'output window, operand 1']
    #allocation5 [shape = 's32[2]{0}', space=sflag, size = 0x8, scoped, tag = 'scoped memory for tpu_custom_call.1']
    %8 = vsyncpa [#allocation3], 0
    %s9 = scalar_lea.sflag [#allocation3], 1
    %10 = vsyncpa %s9, 0
    %11 = vsyncpa [#allocation5], 0
    %s12 = scalar_lea.sflag [#allocation5], 1
    %13 = vsyncpa %s12, 0
    loop: start=0, step=1, limit=4
    $region2: #{tpu_custom_call.1} parent=1 // loop_pre_header
      _
    $region3: #{tpu_custom_call.1} parent=1 // loop_header
      %s15 = sphi 0, %s19
      %p16 = scmp.ge.s32.totalorder %s15, 4
      %s22 = sphi 0, %s34
      %s23 = sphi 0, %s30
      %s24 = sphi 0, %s22
      %s25 = sphi 0, %s23
      %s26 = sphi 0, %s24
      %s27 = sphi 0, %s25
      %s39 = sphi 0, %s41
      %s42 = sphi 0, %s39
      %s43 = sphi 0, %s42
      %s59 = sphi 0, %s43
      %s65 = sphi 0, %s67
      %s68 = sphi 0, %s65
      %s69 = sphi 0, %s68
      %s85 = sphi 0, %s69
      %s91 = sphi 0, %s93
      %s94 = sphi 0, %s91
      %s95 = sphi 0, %s94
      %s111 = sphi 0, %s95
    $region4: #{tpu_custom_call.1} parent=1 // loop_header_branch
      %18 = sbr.rel (%p16) target = $region8
    $region5: #{tpu_custom_call.1} parent=1 // loop_body
      %s20 = ssub.s32 %s15, 1
      %s21 = ssub.s32 %s15, 2
      %s28 = sadd.s32 1, %s23
      %p29 = scmp.ge.s32.totalorder %s28, 1
      %s30 = scalar_select %p29, 0, %s28
      %s31 = sadd.s32 1, %s22
      %s32 = scalar_select %p29, %s31, %s22
      %p33 = scmp.ge.s32.totalorder %s32, 2
      %s34 = scalar_select %p33, 0, %s32
      %s35 = ssub.s32 %s22, %s34
      %s36 = ssub.s32 %s23, %s30
      %s37 = sor.u32 %s35, %s36
      %p38 = scmp.eq.s32.totalorder %s37, 0
      %s40 = sadd.s32 %s39, 1
      %s41 = scalar_select %p38, %s39, %s40
      %p44 = pneg %p38
      %p45 = scmp.eq.s32.totalorder %s15, 1
      %p46 = por %p44, %p45
      %p47 = scmp.ne.s32.totalorder %s39, %s42
      %p48 = scmp.eq.s32.totalorder %s15, 0
      %p49 = por %p47, %p48
      %p50 = scmp.ne.s32.totalorder %s39, %s42
      %p51 = scmp.eq.s32.totalorder %s20, 1
      %p52 = por %p50, %p51
      %p53 = scmp.ne.s32.totalorder %s42, %s43
      %p54 = scmp.eq.s32.totalorder %s20, 0
      %p55 = por %p53, %p54
      %p56 = scmp.ne.s32.totalorder %s42, %s43
      %p57 = scmp.eq.s32.totalorder %s21, 1
      %p58 = por %p56, %p57
      %p60 = scmp.ne.s32.totalorder %s43, %s59
      %p61 = scmp.eq.s32.totalorder %s21, 0
      %p62 = por %p60, %p61
      %s63 = ssub.s32 %s22, %s34
      %p64 = scmp.eq.s32.totalorder %s63, 0
      %s66 = sadd.s32 %s65, 1
      %s67 = scalar_select %p64, %s65, %s66
      %p70 = pneg %p64
      %p71 = scmp.eq.s32.totalorder %s15, 1
      %p72 = por %p70, %p71
      %p73 = scmp.ne.s32.totalorder %s65, %s68
      %p74 = scmp.eq.s32.totalorder %s15, 0
      %p75 = por %p73, %p74
      %p76 = scmp.ne.s32.totalorder %s65, %s68
      %p77 = scmp.eq.s32.totalorder %s20, 1
      %p78 = por %p76, %p77
      %p79 = scmp.ne.s32.totalorder %s68, %s69
      %p80 = scmp.eq.s32.totalorder %s20, 0
      %p81 = por %p79, %p80
      %p82 = scmp.ne.s32.totalorder %s68, %s69
      %p83 = scmp.eq.s32.totalorder %s21, 1
      %p84 = por %p82, %p83
      %p86 = scmp.ne.s32.totalorder %s69, %s85
      %p87 = scmp.eq.s32.totalorder %s21, 0
      %p88 = por %p86, %p87
      %s89 = ssub.s32 %s22, %s34
      %p90 = scmp.eq.s32.totalorder %s89, 0
      %s92 = sadd.s32 %s91, 1
      %s93 = scalar_select %p90, %s91, %s92
      %p96 = pneg %p90
      %p97 = scmp.eq.s32.totalorder %s15, 1
      %p98 = por %p96, %p97
      %p99 = scmp.ne.s32.totalorder %s91, %s94
      %p100 = scmp.eq.s32.totalorder %s15, 0
      %p101 = por %p99, %p100
      %p102 = scmp.ne.s32.totalorder %s91, %s94
      %p103 = scmp.eq.s32.totalorder %s20, 1
      %p104 = por %p102, %p103
      %p105 = scmp.ne.s32.totalorder %s94, %s95
      %p106 = scmp.eq.s32.totalorder %s20, 0
      %p107 = por %p105, %p106
      %p108 = scmp.ne.s32.totalorder %s94, %s95
      %p109 = scmp.eq.s32.totalorder %s21, 1
      %p110 = por %p108, %p109
      %p112 = scmp.ne.s32.totalorder %s95, %s111
      %p113 = scmp.eq.s32.totalorder %s21, 0
      %p114 = por %p112, %p113
      %p115 = scmp.le.s32.totalorder 1, %s15
      %p116 = scmp.lt.s32.totalorder %s15, 3
      %p117 = pnand %p115, %p116
      %p118 = pneg %p117
      // Predicated region
      $region9: #{tpu_custom_call.1} parent=5 // pred_check
        _
      $region10: #{tpu_custom_call.1} parent=5 // pred_check_branch
        %120 = sbr.rel (%p117) target = $region12
      $region11: #{tpu_custom_call.1} parent=5 // pred_region
        %s121 = ssub.s32 %s15, 1
      $region12: #{tpu_custom_call.1} parent=5 // pred_fallthru
        _
      %p122 = scmp.lt.s32.totalorder %s15, 2
      // Predicated region
      $region13: #{tpu_custom_call.1} parent=5 // pred_check
        %p123 = pneg %p122
      $region14: #{tpu_custom_call.1} parent=5 // pred_check_branch
        %125 = sbr.rel (%p123) target = $region16
      $region15: #{tpu_custom_call.1} parent=5 // pred_region
        // Predicated region
        $region17: #{tpu_custom_call.1} parent=15 // pred_check
          %p126 = pneg %p49
        $region18: #{tpu_custom_call.1} parent=15 // pred_check_branch
          %128 = sbr.rel (%p126) target = $region20
        $region19: #{tpu_custom_call.1} parent=15 // pred_region
          %s129 = smul.u32 32, %s23
          %p130 = scmp.lt.s32.totalorder %s22, 1
          %s131 = scalar_select %p130, %s22, 1
          %p132 = scmp.lt.s32.totalorder %s129, 31
          %s133 = scalar_select %p132, %s129, 31
          %s134 = smul.addr %s131, 32
          %s135 = sadd.s32 %s133, %s134
          %s136 = smul.addr %s135, 8
          %s137 = scalar_lea.vmem %s0, %s136
          %s138 = smul.u32 32, %s23
        $region20: #{tpu_custom_call.1} parent=15 // pred_fallthru
          _
      $region16: #{tpu_custom_call.1} parent=5 // pred_fallthru
        _
      %p139 = scmp.le.s32.totalorder 1, %s15
      %p140 = scmp.lt.s32.totalorder %s15, 3
      %p141 = pnand %p139, %p140
      %p142 = pneg %p141
      // Predicated region
      $region21: #{tpu_custom_call.1} parent=5 // pred_check
        _
      $region22: #{tpu_custom_call.1} parent=5 // pred_check_branch
        %144 = sbr.rel (%p141) target = $region24
      $region23: #{tpu_custom_call.1} parent=5 // pred_region
        %s145 = ssub.s32 %s15, 1
        %s146 = smul.u32 32, %s25
        %p147 = scmp.lt.s32.totalorder %s24, 1
        %s148 = scalar_select %p147, %s24, 1
        %p149 = scmp.lt.s32.totalorder %s146, 31
        %s150 = scalar_select %p149, %s146, 31
        %s151 = smul.addr %s148, 32
        %s152 = sadd.s32 %s150, %s151
        %s153 = smul.addr %s152, 8
        %s154 = scalar_lea.vmem %s0, %s153
        %p155 = pneg %p55
        %p156 = pneg %p52
        %p157 = pneg %p81
        %p158 = pneg %p78
        %s159 = sand.u32 %s68, 1
        %s160 = scalar_lea.sflag [#allocation3], %s159
        %s161 = sand.u32 %s68, 1
        %s162 = scalar_lea.vmem [#allocation2], %s161
        %p163 = pneg %p107
        %p164 = pneg %p104
        %s165 = sand.u32 %s94, 1
        %s166 = scalar_lea.sflag [#allocation5], %s165
        %s167 = sand.u32 %s94, 1
        %s168 = scalar_lea.vmem [#allocation4], %s167
        %s169 = smul.u32 32, %s25
        %p170 = scmp.lt.s32.totalorder %s24, 1
        %s171 = scalar_select %p170, %s24, 1
        %p172 = scmp.lt.s32.totalorder %s169, 31
        %s173 = scalar_select %p172, %s169, 31
        %s174 = smul.addr %s171, 32
        %s175 = sadd.s32 %s173, %s174
        %s176 = smul.addr %s175, 8
        %s177 = scalar_lea.vmem %s0, %s176
        %s178 = smul.u32 32, %s25
        %p179 = scmp.eq.s32.totalorder %s25, 0
        // Predicated region
        $region25: #{tpu_custom_call.1} parent=23 // pred_check
          %p180 = pneg %p179
        $region26: #{tpu_custom_call.1} parent=23 // pred_check_branch
          %182 = sbr.rel (%p180) target = $region28
        $region27: #{tpu_custom_call.1} parent=23 // pred_region
          %vm183 = vcmask 516096
          %184 = vst.msk [vmem:[%s162] sm:$0x1] %vm183, 0.0
          %185 = vst.msk [vmem:[%s168] sm:$0x1] %vm183, 0.0
        $region28: #{tpu_custom_call.1} parent=23 // pred_fallthru
          _
        %v186 = vld [vmem:[%s177] sm:$0xff]
        %v187 = vld [vmem:[%s177 + $0x8] sm:$0xff]
        %v188 = vld [vmem:[%s177 + $0x10] sm:$0xff]
        %v189 = vld [vmem:[%s177 + $0x18] sm:$0xff]
        %v190 = vld [vmem:[%s177 + $0x20] sm:$0xff]
        %v191 = vld [vmem:[%s177 + $0x28] sm:$0xff]
        %v192 = vld [vmem:[%s177 + $0x30] sm:$0xff]
        %v193 = vld [vmem:[%s177 + $0x38] sm:$0xff]
        %v194 = vld [vmem:[%s177 + $0x40] sm:$0xff]
        %v195 = vld [vmem:[%s177 + $0x48] sm:$0xff]
        %v196 = vld [vmem:[%s177 + $0x50] sm:$0xff]
        %v197 = vld [vmem:[%s177 + $0x58] sm:$0xff]
        %v198 = vld [vmem:[%s177 + $0x60] sm:$0xff]
        %v199 = vld [vmem:[%s177 + $0x68] sm:$0xff]
        %v200 = vld [vmem:[%s177 + $0x70] sm:$0xff]
        %v201 = vld [vmem:[%s177 + $0x78] sm:$0xff]
        %v202 = vld [vmem:[%s177 + $0x80] sm:$0xff]
        %v203 = vld [vmem:[%s177 + $0x88] sm:$0xff]
        %v204 = vld [vmem:[%s177 + $0x90] sm:$0xff]
        %v205 = vld [vmem:[%s177 + $0x98] sm:$0xff]
        %v206 = vld [vmem:[%s177 + $0xa0] sm:$0xff]
        %v207 = vld [vmem:[%s177 + $0xa8] sm:$0xff]
        %v208 = vld [vmem:[%s177 + $0xb0] sm:$0xff]
        %v209 = vld [vmem:[%s177 + $0xb8] sm:$0xff]
        %v210 = vld [vmem:[%s177 + $0xc0] sm:$0xff]
        %v211 = vld [vmem:[%s177 + $0xc8] sm:$0xff]
        %v212 = vld [vmem:[%s177 + $0xd0] sm:$0xff]
        %v213 = vld [vmem:[%s177 + $0xd8] sm:$0xff]
        %v214 = vld [vmem:[%s177 + $0xe0] sm:$0xff]
        %v215 = vld [vmem:[%s177 + $0xe8] sm:$0xff]
        %v216 = vld [vmem:[%s177 + $0xf0] sm:$0xff]
        %v217 = vld [vmem:[%s177 + $0xf8] sm:$0xff]
        %v218 = vld [vmem:[%s162] sm:$0x1]
        %vm219 = vcmask 523264
        %v220 = vsel %vm219, %v186, 0.0
        %v221 = vsel %vm219, %v187, 0.0
        %v222 = vadd.f32 %v220, %v221
        %v223 = vsel %vm219, %v188, 0.0
        %v224 = vadd.f32 %v222, %v223
        %v225 = vsel %vm219, %v189, 0.0
        %v226 = vadd.f32 %v224, %v225
        %v227 = vsel %vm219, %v190, 0.0
        %v228 = vadd.f32 %v226, %v227
        %v229 = vsel %vm219, %v191, 0.0
        %v230 = vadd.f32 %v228, %v229
        %v231 = vsel %vm219, %v192, 0.0
        %v232 = vadd.f32 %v230, %v231
        %v233 = vsel %vm219, %v193, 0.0
        %v234 = vadd.f32 %v232, %v233
        %v235 = vsel %vm219, %v194, 0.0
        %v236 = vadd.f32 %v234, %v235
        %v237 = vsel %vm219, %v195, 0.0
        %v238 = vadd.f32 %v236, %v237
        %v239 = vsel %vm219, %v196, 0.0
        %v240 = vadd.f32 %v238, %v239
        %v241 = vsel %vm219, %v197, 0.0
        %v242 = vadd.f32 %v240, %v241
        %v243 = vsel %vm219, %v198, 0.0
        %v244 = vadd.f32 %v242, %v243
        %v245 = vsel %vm219, %v199, 0.0
        %v246 = vadd.f32 %v244, %v245
        %v247 = vsel %vm219, %v200, 0.0
        %v248 = vadd.f32 %v246, %v247
        %v249 = vsel %vm219, %v201, 0.0
        %v250 = vadd.f32 %v248, %v249
        %v251 = vsel %vm219, %v202, 0.0
        %v252 = vadd.f32 %v250, %v251
        %v253 = vsel %vm219, %v203, 0.0
        %v254 = vadd.f32 %v252, %v253
        %v255 = vsel %vm219, %v204, 0.0
        %v256 = vadd.f32 %v254, %v255
        %v257 = vsel %vm219, %v205, 0.0
        %v258 = vadd.f32 %v256, %v257
        %v259 = vsel %vm219, %v206, 0.0
        %v260 = vadd.f32 %v258, %v259
        %v261 = vsel %vm219, %v207, 0.0
        %v262 = vadd.f32 %v260, %v261
        %v263 = vsel %vm219, %v208, 0.0
        %v264 = vadd.f32 %v262, %v263
        %v265 = vsel %vm219, %v209, 0.0
        %v266 = vadd.f32 %v264, %v265
        %v267 = vsel %vm219, %v210, 0.0
        %v268 = vadd.f32 %v266, %v267
        %v269 = vsel %vm219, %v211, 0.0
        %v270 = vadd.f32 %v268, %v269
        %v271 = vsel %vm219, %v212, 0.0
        %v272 = vadd.f32 %v270, %v271
        %v273 = vsel %vm219, %v213, 0.0
        %v274 = vadd.f32 %v272, %v273
        %v275 = vsel %vm219, %v214, 0.0
        %v276 = vadd.f32 %v274, %v275
        %v277 = vsel %vm219, %v215, 0.0
        %v278 = vadd.f32 %v276, %v277
        %v279 = vsel %vm219, %v216, 0.0
        %v280 = vadd.f32 %v278, %v279
        %v281 = vsel %vm219, %v217, 0.0
        %v282 = vadd.f32 %v280, %v281
        %v283 = vrot.slane %v282, 4
        %v284 = vadd.f32 %v282, %v283
        %v285 = vrot.slane %v284, 2
        %v286 = vadd.f32 %v284, %v285
        %v287 = vrot.slane %v286, 1
        %v288 = vadd.f32 %v286, %v287
        %v289 = vadd.f32 %v218, %v288
        %vm290 = vcmask 516096
        %291 = vst.msk [vmem:[%s162] sm:$0x1] %vm290, %v289
        %v292 = vld [vmem:[%s168] sm:$0x1]
        %v293 = vmul.f32 %v186, %v186
        %v294 = vmul.f32 %v187, %v187
        %v295 = vmul.f32 %v188, %v188
        %v296 = vmul.f32 %v189, %v189
        %v297 = vmul.f32 %v190, %v190
        %v298 = vmul.f32 %v191, %v191
        %v299 = vmul.f32 %v192, %v192
        %v300 = vmul.f32 %v193, %v193
        %v301 = vmul.f32 %v194, %v194
        %v302 = vmul.f32 %v195, %v195
        %v303 = vmul.f32 %v196, %v196
        %v304 = vmul.f32 %v197, %v197
        %v305 = vmul.f32 %v198, %v198
        %v306 = vmul.f32 %v199, %v199
        %v307 = vmul.f32 %v200, %v200
        %v308 = vmul.f32 %v201, %v201
        %v309 = vmul.f32 %v202, %v202
        %v310 = vmul.f32 %v203, %v203
        %v311 = vmul.f32 %v204, %v204
        %v312 = vmul.f32 %v205, %v205
        %v313 = vmul.f32 %v206, %v206
        %v314 = vmul.f32 %v207, %v207
        %v315 = vmul.f32 %v208, %v208
        %v316 = vmul.f32 %v209, %v209
        %v317 = vmul.f32 %v210, %v210
        %v318 = vmul.f32 %v211, %v211
        %v319 = vmul.f32 %v212, %v212
        %v320 = vmul.f32 %v213, %v213
        %v321 = vmul.f32 %v214, %v214
        %v322 = vmul.f32 %v215, %v215
        %v323 = vmul.f32 %v216, %v216
        %v324 = vmul.f32 %v217, %v217
        %v325 = vsel %vm219, %v293, 0.0
        %v326 = vsel %vm219, %v294, 0.0
        %v327 = vadd.f32 %v325, %v326
        %v328 = vsel %vm219, %v295, 0.0
        %v329 = vadd.f32 %v327, %v328
        %v330 = vsel %vm219, %v296, 0.0
        %v331 = vadd.f32 %v329, %v330
        %v332 = vsel %vm219, %v297, 0.0
        %v333 = vadd.f32 %v331, %v332
        %v334 = vsel %vm219, %v298, 0.0
        %v335 = vadd.f32 %v333, %v334
        %v336 = vsel %vm219, %v299, 0.0
        %v337 = vadd.f32 %v335, %v336
        %v338 = vsel %vm219, %v300, 0.0
        %v339 = vadd.f32 %v337, %v338
        %v340 = vsel %vm219, %v301, 0.0
        %v341 = vadd.f32 %v339, %v340
        %v342 = vsel %vm219, %v302, 0.0
        %v343 = vadd.f32 %v341, %v342
        %v344 = vsel %vm219, %v303, 0.0
        %v345 = vadd.f32 %v343, %v344
        %v346 = vsel %vm219, %v304, 0.0
        %v347 = vadd.f32 %v345, %v346
        %v348 = vsel %vm219, %v305, 0.0
        %v349 = vadd.f32 %v347, %v348
        %v350 = vsel %vm219, %v306, 0.0
        %v351 = vadd.f32 %v349, %v350
        %v352 = vsel %vm219, %v307, 0.0
        %v353 = vadd.f32 %v351, %v352
        %v354 = vsel %vm219, %v308, 0.0
        %v355 = vadd.f32 %v353, %v354
        %v356 = vsel %vm219, %v309, 0.0
        %v357 = vadd.f32 %v355, %v356
        %v358 = vsel %vm219, %v310, 0.0
        %v359 = vadd.f32 %v357, %v358
        %v360 = vsel %vm219, %v311, 0.0
        %v361 = vadd.f32 %v359, %v360
        %v362 = vsel %vm219, %v312, 0.0
        %v363 = vadd.f32 %v361, %v362
        %v364 = vsel %vm219, %v313, 0.0
        %v365 = vadd.f32 %v363, %v364
        %v366 = vsel %vm219, %v314, 0.0
        %v367 = vadd.f32 %v365, %v366
        %v368 = vsel %vm219, %v315, 0.0
        %v369 = vadd.f32 %v367, %v368
        %v370 = vsel %vm219, %v316, 0.0
        %v371 = vadd.f32 %v369, %v370
        %v372 = vsel %vm219, %v317, 0.0
        %v373 = vadd.f32 %v371, %v372
        %v374 = vsel %vm219, %v318, 0.0
        %v375 = vadd.f32 %v373, %v374
        %v376 = vsel %vm219, %v319, 0.0
        %v377 = vadd.f32 %v375, %v376
        %v378 = vsel %vm219, %v320, 0.0
        %v379 = vadd.f32 %v377, %v378
        %v380 = vsel %vm219, %v321, 0.0
        %v381 = vadd.f32 %v379, %v380
        %v382 = vsel %vm219, %v322, 0.0
        %v383 = vadd.f32 %v381, %v382
        %v384 = vsel %vm219, %v323, 0.0
        %v385 = vadd.f32 %v383, %v384
        %v386 = vsel %vm219, %v324, 0.0
        %v387 = vadd.f32 %v385, %v386
        %v388 = vrot.slane %v387, 4
        %v389 = vadd.f32 %v387, %v388
        %v390 = vrot.slane %v389, 2
        %v391 = vadd.f32 %v389, %v390
        %v392 = vrot.slane %v391, 1
        %v393 = vadd.f32 %v391, %v392
        %v394 = vadd.f32 %v292, %v393
        %395 = vst.msk [vmem:[%s168] sm:$0x1] %vm290, %v394
        %s396 = sand.u32 %s68, 1
        %s397 = scalar_lea.sflag [#allocation3], %s396
        %s398 = sand.u32 %s68, 1
        %s399 = scalar_lea.vmem [#allocation2], %s398
        %s400 = sand.u32 %s94, 1
        %s401 = scalar_lea.sflag [#allocation5], %s400
        %s402 = sand.u32 %s94, 1
        %s403 = scalar_lea.vmem [#allocation4], %s402
        // Predicated region
        $region29: #{tpu_custom_call.1} parent=23 // pred_check
          %p404 = pneg %p78
        $region30: #{tpu_custom_call.1} parent=23 // pred_check_branch
          %406 = sbr.rel (%p404) target = $region32
        $region31: #{tpu_custom_call.1} parent=23 // pred_region
          %s408 = ssub.s32 16, 16
          %409 = vsyncadd %s397, %s408
          %s410 = smul.addr %s24, 16
          %s411 = scalar_lea.hbm %s1, %s410
          %s413 = sshll.u32 %s399, 4
          %s414 = int_to_ptr.vmem [resolvable:$true] %s413
          %416 = dma.vmem_to_hbm [thread:$0]  %s414, 16, %s411, %s397
        $region32: #{tpu_custom_call.1} parent=23 // pred_fallthru
          _
        // Predicated region
        $region33: #{tpu_custom_call.1} parent=23 // pred_check
          %p417 = pneg %p104
        $region34: #{tpu_custom_call.1} parent=23 // pred_check_branch
          %419 = sbr.rel (%p417) target = $region36
        $region35: #{tpu_custom_call.1} parent=23 // pred_region
          %s421 = ssub.s32 16, 16
          %422 = vsyncadd %s401, %s421
          %s423 = smul.addr %s24, 16
          %s424 = scalar_lea.hbm %s2, %s423
          %s426 = sshll.u32 %s403, 4
          %s427 = int_to_ptr.vmem [resolvable:$true] %s426
          %429 = dma.vmem_to_hbm [thread:$0]  %s427, 16, %s424, %s401
        $region36: #{tpu_custom_call.1} parent=23 // pred_fallthru
          _
      $region24: #{tpu_custom_call.1} parent=5 // pred_fallthru
        _
      %p430 = scmp.le.s32.totalorder 2, %s15
      // Predicated region
      $region37: #{tpu_custom_call.1} parent=5 // pred_check
        %p431 = pneg %p430
      $region38: #{tpu_custom_call.1} parent=5 // pred_check_branch
        %433 = sbr.rel (%p431) target = $region40
      $region39: #{tpu_custom_call.1} parent=5 // pred_region
        %s434 = ssub.s32 %s15, 2
        // Predicated region
        $region41: #{tpu_custom_call.1} parent=39 // pred_check
          %p435 = pneg %p84
        $region42: #{tpu_custom_call.1} parent=39 // pred_check_branch
          %437 = sbr.rel (%p435) target = $region44
        $region43: #{tpu_custom_call.1} parent=39 // pred_region
          %s438 = sand.u32 %s69, 1
          %s439 = scalar_lea.sflag [#allocation3], %s438
          %s440 = sand.u32 %s69, 1
          %s441 = scalar_lea.vmem [#allocation2], %s440
          %442 = dma.done %s439, 16
        $region44: #{tpu_custom_call.1} parent=39 // pred_fallthru
          _
        // Predicated region
        $region45: #{tpu_custom_call.1} parent=39 // pred_check
          %p443 = pneg %p110
        $region46: #{tpu_custom_call.1} parent=39 // pred_check_branch
          %445 = sbr.rel (%p443) target = $region48
        $region47: #{tpu_custom_call.1} parent=39 // pred_region
          %s446 = sand.u32 %s95, 1
          %s447 = scalar_lea.sflag [#allocation5], %s446
          %s448 = sand.u32 %s95, 1
          %s449 = scalar_lea.vmem [#allocation4], %s448
          %450 = dma.done %s447, 16
        $region48: #{tpu_custom_call.1} parent=39 // pred_fallthru
          _
      $region40: #{tpu_custom_call.1} parent=5 // pred_fallthru
        _
    $region6: #{tpu_custom_call.1} parent=1 // loop_footer
      %s19 = sadd.s32 1, %s15
    $region7: #{tpu_custom_call.1} parent=1 // loop_footer_branch
      %14 = sbr.rel target = $region3
    $region8: #{tpu_custom_call.1} parent=1 // loop_exit
      _
    %451 = vsyncpa [#allocation3], 1
    %s452 = scalar_lea.sflag [#allocation3], 1
    %453 = vsyncpa %s452, 1
    %454 = vsyncpa [#allocation5], 1
    %s455 = scalar_lea.sflag [#allocation5], 1
    %456 = vsyncpa %s455, 1

</llo_original>
